<compile_context>
chip_gen: v6e
topology: v6e:2x2x1
jax: 0.10.0
libtpu: 0.0.40
codegen_flags: <defaults>
</compile_context>

<pallas_src>
import numpy as np

import jax
import jax.numpy as jnp
from jax import lax
from jax.experimental import pallas as pl
from jax.experimental.pallas import tpu as pltpu


# ------------------------------------------------------------------------- #
# Pallas kernel
# ------------------------------------------------------------------------- #
def _make_cnn_kernel(B, P, Hp, F2, use_mask):
    """Fused CNN forward kernel. All shapes static / closed over.

    Ref layout (inputs .. output .. scratch):
      lhs   : (P*Hp*B, Kmax*C*W)  im2col rows, row = (p*Hp + j)*B + b
      wbig  : (Kmax*C*W, F2)      all-branch conv weight, F2 = n_br*F
      bconv : (1, F2)             conv biases
      [mask : (P*Hp*B, F2)]       only when some pool rows fall in padding
      w1r   : (Hp*F2, 64)         fc1 weight, rows ordered (j, branch, f)
      b1    : (1, 64)
      w2t   : (64, 16),  b2 : (1, 16)
      w3p   : (16, OPAD), b3p : (1, OPAD)   (zero-padded to lane-dense OPAD)
      out   : (B, OPAD)
      feat  : (B, Hp*F2)          VMEM scratch for the pooled feature slab
    """
    G = Hp * B  # rows per pool-offset block; pooled rows are ordered (j, b)

    def kernel(*refs):
        if use_mask:
            (lhs_ref, wbig_ref, bconv_ref, mask_ref, w1r_ref, b1_ref,
             w2t_ref, b2_ref, w3p_ref, b3p_ref, out_ref, feat_ref) = refs
        else:
            mask_ref = None
            (lhs_ref, wbig_ref, bconv_ref, w1r_ref, b1_ref,
             w2t_ref, b2_ref, w3p_ref, b3p_ref, out_ref, feat_ref) = refs

        # --- every branch's conv, every batch element: ONE MXU matmul -------
        acc = jnp.dot(lhs_ref[...], wbig_ref[...],
                      preferred_element_type=jnp.float32)       # (P*Hp*B, F2)
        acc = jnp.maximum(acc + bconv_ref[...], 0.0)             # bias + ReLU
        if use_mask:
            # pool windows falling in -inf padding: post-ReLU values are >= 0
            # and every window has >= 1 real row, so zeroing is equivalent.
            acc = acc * mask_ref[...]

        # --- MaxPool over the P pool offsets: contiguous block max chain ----
        pooled = acc[0:G, :]
        for p in range(1, P):
            pooled = jnp.maximum(pooled, acc[p * G:(p + 1) * G, :])  # (Hp*B, F2)

        # --- gather pooled features into a (B, Hp*F2) slab ------------------
        # feat lane order is (j, branch, f); fc1 weight was regrouped to match.
        for j in range(Hp):
            feat_ref[:, j * F2:(j + 1) * F2] = pooled[j * B:(j + 1) * B, :]

        # --- FC head, batched over B (dropout = identity, eval mode) --------
        h1 = jnp.dot(feat_ref[...], w1r_ref[...],
                     preferred_element_type=jnp.float32) + b1_ref[...]
        h1 = jnp.maximum(h1, 0.0)
        h2 = jnp.dot(h1, w2t_ref[...],
                     preferred_element_type=jnp.float32) + b2_ref[...]
        out_ref[...] = jnp.dot(h2, w3p_ref[...],
                               preferred_element_type=jnp.float32) + b3p_ref[...]

    return kernel


# ------------------------------------------------------------------------- #
# Wrapper (layout glue in plain JAX)
# ------------------------------------------------------------------------- #
def cnn_forward_pallas(x, params, kernel_list, filter_num, output_size):
    B, C, H, W = x.shape
    F = filter_num
    CW = C * W
    n_br = len(kernel_list)
    F2 = n_br * F

    P = (H + 3) // 4
    ph = (H - H // 4 * 4 + 1) // 2
    pads = [(k - 1) // 2 for k in kernel_list]
    hconvs = [H + 2 * p - k + 1 for k, p in zip(kernel_list, pads)]
    hps = [(hc + 2 * ph - P) // P + 1 for hc in hconvs]
    assert len(set(hps)) == 1, "all branches must produce the same pooled height"
    Hp = hps[0]
    assert Hp == 3, "fc expects Filter_num * len(Kernel_list) * 3 features"

    hidden1, hidden2 = 64, 16
    Kmax = max(kernel_list)
    pad_max = max(pads)
    Hslab = H + 2 * pad_max

    # --- single padded x slab: NCHW -> (B, Hslab, C*W) -----------------------
    x_mat = jnp.transpose(x, (0, 2, 1, 3)).reshape(B, H, CW)
    x_slab = jnp.pad(x_mat, ((0, 0), (pad_max, pad_max), (0, 0)))

    # --- im2col LHS (shared by all branches) ---------------------------------
    # one row per (pool_offset p, pool_pos j, batch b); conv row r = j*P + p - ph
    rows = np.array([j * P + p - ph for p in range(P) for j in range(Hp)])
    gidx = np.clip(rows[:, None] + np.arange(Kmax)[None, :], 0, Hslab - 1)
    g = x_slab[:, gidx.reshape(-1), :].reshape(B, P * Hp, Kmax * CW)
    lhs = jnp.transpose(g, (1, 0, 2)).reshape(P * Hp * B, Kmax * CW)

    # --- unified conv weight: branch i occupies columns [i*F, (i+1)*F) -------
    Wbig = jnp.zeros((Kmax * CW, F2), jnp.float32)
    bconv = jnp.zeros((1, F2), jnp.float32)
    for i, (k, p_i) in enumerate(zip(kernel_list, pads)):
        wc = params[f"conv{i}_w"]                                  # (F, C, k, W)
        w_t = jnp.transpose(wc, (2, 1, 3, 0)).reshape(k * CW, F)   # rows (tap,c,w)
        off = (pad_max - p_i) * CW                                 # tap alignment
        Wbig = Wbig.at[off:off + k * CW, i * F:(i + 1) * F].set(w_t)
        bconv = bconv.at[0, i * F:(i + 1) * F].set(params[f"conv{i}_b"])

    # --- mask for pool rows outside the valid conv range (none here) ---------
    valid = np.ones((P * Hp, F2), np.float32)
    for q, r in enumerate(rows):
        for i, hc in enumerate(hconvs):
            if not (0 <= r < hc):
                valid[q, i * F:(i + 1) * F] = 0.0
    use_mask = bool((valid != 1.0).any())

    # --- fc weights: regroup fc1 to the kernel's (j, branch, f) lane order ---
    w1 = params["fc1_w"]                                   # (64, n_br*F*Hp)
    w1r = jnp.transpose(w1.reshape(hidden1, n_br, F, Hp),
                        (3, 1, 2, 0)).reshape(Hp * F2, hidden1)
    b1 = params["fc1_b"].reshape(1, hidden1)
    w2t = params["fc2_w"].T                                # (64, 16)
    b2 = params["fc2_b"].reshape(1, hidden2)

    OPAD = ((output_size + 127) // 128) * 128              # lane-dense output
    w3p = jnp.zeros((hidden2, OPAD), jnp.float32).at[:, :output_size].set(
        params["fc3_w"].T)
    b3p = jnp.zeros((1, OPAD), jnp.float32).at[0, :output_size].set(
        params["fc3_b"])

    args = [lhs, Wbig, bconv]
    if use_mask:
        args.append(jnp.asarray(np.repeat(valid, B, axis=0)))
    args += [w1r, b1, w2t, b2, w3p, b3p]

    kern = _make_cnn_kernel(B, P, Hp, F2, use_mask)
    vmem = pl.BlockSpec(memory_space=pltpu.MemorySpace.VMEM)
    out_pad = pl.pallas_call(
        kern,
        out_shape=jax.ShapeDtypeStruct((B, OPAD), jnp.float32),
        in_specs=[vmem] * len(args),
        out_specs=vmem,
        scratch_shapes=[pltpu.VMEM((B, Hp * F2), jnp.float32)],
        compiler_params=pltpu.CompilerParams(vmem_limit_bytes=4 * 1024 * 1024),
    )(*args)
    # TODO(synk): for large B, add a ("parallel",) grid over the batch axis
    # (2 TensorCores on v7x) instead of the single-invocation layout.
    return out_pad[:, :output_size]


# ------------------------------------------------------------------------- #
# Pure-JAX reference (mirrors PyTorch semantics exactly)
# ------------------------------------------------------------------------- #
def cnn_forward_ref(x, params, kernel_list, filter_num, output_size):
    B, C, H, W = x.shape
    P = (H + 3) // 4
    ph = (H - H // 4 * 4 + 1) // 2
    outs = []
    for i, k in enumerate(kernel_list):
        p = (k - 1) // 2
        y = lax.conv_general_dilated(
            x, params[f"conv{i}_w"], window_strides=(1, 1),
            padding=((p, p), (0, 0)),
            dimension_numbers=("NCHW", "OIHW", "NCHW"))
        y = y + params[f"conv{i}_b"].reshape(1, -1, 1, 1)
        y = jnp.maximum(y, 0.0)
        y = lax.reduce_window(
            y, -jnp.inf, lax.max,
            window_dimensions=(1, 1, P, 1), window_strides=(1, 1, P, 1),
            padding=((0, 0), (0, 0), (ph, ph), (0, 0)))
        outs.append(y)
    out = jnp.concatenate(outs, axis=1).reshape(B, -1)
    out = jnp.maximum(out @ params["fc1_w"].T + params["fc1_b"], 0.0)
    out = out @ params["fc2_w"].T + params["fc2_b"]
    out = out @ params["fc3_w"].T + params["fc3_b"]
    return out


# ------------------------------------------------------------------------- #
if __name__ == "__main__":
    # Module hyper-params (chosen so pooled height == 3, as fc requires)
    B, C, H, W = 2, 4, 16, 16          # Channel_in=4, Height_in=16, Width_in=16
    filter_num = 8                     # Filter_num
    kernel_list = [2, 4]               # Kernel_list
    output_size = 5                    # Output_size
    n_br = len(kernel_list)
    fc_in = filter_num * n_br * 3

    key = jax.random.PRNGKey(0)
    keys = jax.random.split(key, 2 * n_br + 7)

    params = {}
    for i, k in enumerate(kernel_list):
        params[f"conv{i}_w"] = 0.1 * jax.random.normal(
            keys[2 * i], (filter_num, C, k, W), jnp.float32)
        params[f"conv{i}_b"] = 0.1 * jax.random.normal(
            keys[2 * i + 1], (filter_num,), jnp.float32)
    o = 2 * n_br
    params["fc1_w"] = 0.1 * jax.random.normal(keys[o + 0], (64, fc_in), jnp.float32)
    params["fc1_b"] = 0.1 * jax.random.normal(keys[o + 1], (64,), jnp.float32)
    params["fc2_w"] = 0.1 * jax.random.normal(keys[o + 2], (16, 64), jnp.float32)
    params["fc2_b"] = 0.1 * jax.random.normal(keys[o + 3], (16,), jnp.float32)
    params["fc3_w"] = 0.1 * jax.random.normal(keys[o + 4], (output_size, 16), jnp.float32)
    params["fc3_b"] = 0.1 * jax.random.normal(keys[o + 5], (output_size,), jnp.float32)

    x = jax.random.normal(keys[o + 6], (B, C, H, W), jnp.float32)

    y = cnn_forward_pallas(x, params, kernel_list, filter_num, output_size)
    y = jax.block_until_ready(y)

    y_ref = cnn_forward_ref(x, params, kernel_list, filter_num, output_size)
    assert y.shape == (B, output_size)
    assert jnp.allclose(y, y_ref, atol=1e-4, rtol=1e-4), (y, y_ref)

    print("KERNEL_OK")
</pallas_src>

<mosaic_0001>
module attributes {stable_mosaic.version = 11 : i64} {
  func.func @kernel(%arg0: memref<24x256xf32, #tpu.memory_space<vmem>>, %arg1: memref<256x16xf32, #tpu.memory_space<vmem>>, %arg2: memref<1x16xf32, #tpu.memory_space<vmem>>, %arg3: memref<48x64xf32, #tpu.memory_space<vmem>>, %arg4: memref<1x64xf32, #tpu.memory_space<vmem>>, %arg5: memref<64x16xf32, #tpu.memory_space<vmem>>, %arg6: memref<1x16xf32, #tpu.memory_space<vmem>>, %arg7: memref<16x128xf32, #tpu.memory_space<vmem>>, %arg8: memref<1x128xf32, #tpu.memory_space<vmem>>, %arg9: memref<2x128xf32, #tpu.memory_space<vmem>>, %arg10: memref<2x48xf32, #tpu.memory_space<vmem>>) attributes {dimension_semantics = [], scalar_prefetch = 0 : i64, scratch_operands = 1 : i64, tpu.core_type = #tpu.core_type<tc>} {
    %c0 = arith.constant 0 : index
    %c0_0 = arith.constant 0 : index
    %0 = vector.load %arg0[%c0, %c0_0] : memref<24x256xf32, #tpu.memory_space<vmem>>, vector<24x256xf32>
    %c0_1 = arith.constant 0 : index
    %c0_2 = arith.constant 0 : index
    %1 = vector.load %arg1[%c0_1, %c0_2] : memref<256x16xf32, #tpu.memory_space<vmem>>, vector<256x16xf32>
    %cst = arith.constant dense<0.000000e+00> : vector<24x16xf32>
    %2 = tpu.matmul %0, %1, %cst {dimension_numbers = #tpu.dot_dimension_numbers<[1], [0], [0], [1], [0, 0, 1, 1], [], []>} : vector<24x256xf32>, vector<256x16xf32>, vector<24x16xf32> -> vector<24x16xf32>
    %c0_3 = arith.constant 0 : index
    %c0_4 = arith.constant 0 : index
    %3 = vector.load %arg2[%c0_3, %c0_4] : memref<1x16xf32, #tpu.memory_space<vmem>>, vector<1x16xf32>
    %4 = vector.broadcast %3 : vector<1x16xf32> to vector<24x16xf32>
    %5 = arith.addf %2, %4 : vector<24x16xf32>
    %cst_5 = arith.constant 0.000000e+00 : f32
    %6 = vector.broadcast %cst_5 : f32 to vector<24x16xf32>
    %7 = arith.maximumf %5, %6 : vector<24x16xf32>
    %8 = vector.extract_strided_slice %7 {offsets = [0, 0], sizes = [6, 16], strides = [1, 1]} : vector<24x16xf32> to vector<6x16xf32>
    %9 = vector.extract_strided_slice %7 {offsets = [6, 0], sizes = [6, 16], strides = [1, 1]} : vector<24x16xf32> to vector<6x16xf32>
    %10 = arith.maximumf %8, %9 : vector<6x16xf32>
    %11 = vector.extract_strided_slice %7 {offsets = [12, 0], sizes = [6, 16], strides = [1, 1]} : vector<24x16xf32> to vector<6x16xf32>
    %12 = arith.maximumf %10, %11 : vector<6x16xf32>
    %13 = vector.extract_strided_slice %7 {offsets = [18, 0], sizes = [6, 16], strides = [1, 1]} : vector<24x16xf32> to vector<6x16xf32>
    %14 = arith.maximumf %12, %13 : vector<6x16xf32>
    %15 = vector.extract_strided_slice %14 {offsets = [0, 0], sizes = [2, 16], strides = [1, 1]} : vector<6x16xf32> to vector<2x16xf32>
    %c0_6 = arith.constant 0 : index
    %c0_7 = arith.constant 0 : index
    %16 = vector.load %arg10[%c0_6, %c0_7] : memref<2x48xf32, #tpu.memory_space<vmem>>, vector<2x16xf32>
    tpu.vector_store %arg10[%c0_6, %c0_7], %15 {strides = array<i32>} : memref<2x48xf32, #tpu.memory_space<vmem>>, vector<2x16xf32>,
    %17 = vector.extract_strided_slice %14 {offsets = [2, 0], sizes = [2, 16], strides = [1, 1]} : vector<6x16xf32> to vector<2x16xf32>
    %c0_8 = arith.constant 0 : index
    %c16 = arith.constant 16 : index
    %18 = vector.load %arg10[%c0_8, %c16] : memref<2x48xf32, #tpu.memory_space<vmem>>, vector<2x16xf32>
    tpu.vector_store %arg10[%c0_8, %c16], %17 {strides = array<i32>} : memref<2x48xf32, #tpu.memory_space<vmem>>, vector<2x16xf32>,
    %19 = vector.extract_strided_slice %14 {offsets = [4, 0], sizes = [2, 16], strides = [1, 1]} : vector<6x16xf32> to vector<2x16xf32>
    %c0_9 = arith.constant 0 : index
    %c32 = arith.constant 32 : index
    %20 = vector.load %arg10[%c0_9, %c32] : memref<2x48xf32, #tpu.memory_space<vmem>>, vector<2x16xf32>
    tpu.vector_store %arg10[%c0_9, %c32], %19 {strides = array<i32>} : memref<2x48xf32, #tpu.memory_space<vmem>>, vector<2x16xf32>,
    %c0_10 = arith.constant 0 : index
    %c0_11 = arith.constant 0 : index
    %21 = vector.load %arg10[%c0_10, %c0_11] : memref<2x48xf32, #tpu.memory_space<vmem>>, vector<2x48xf32>
    %c0_12 = arith.constant 0 : index
    %c0_13 = arith.constant 0 : index
    %22 = vector.load %arg3[%c0_12, %c0_13] : memref<48x64xf32, #tpu.memory_space<vmem>>, vector<48x64xf32>
    %cst_14 = arith.constant dense<0.000000e+00> : vector<2x64xf32>
    %23 = tpu.matmul %21, %22, %cst_14 {dimension_numbers = #tpu.dot_dimension_numbers<[1], [0], [0], [1], [0, 0, 1, 1], [], []>} : vector<2x48xf32>, vector<48x64xf32>, vector<2x64xf32> -> vector<2x64xf32>
    %c0_15 = arith.constant 0 : index
    %c0_16 = arith.constant 0 : index
    %24 = vector.load %arg4[%c0_15, %c0_16] : memref<1x64xf32, #tpu.memory_space<vmem>>, vector<1x64xf32>
    %25 = vector.broadcast %24 : vector<1x64xf32> to vector<2x64xf32>
    %26 = arith.addf %23, %25 : vector<2x64xf32>
    %cst_17 = arith.constant 0.000000e+00 : f32
    %27 = vector.broadcast %cst_17 : f32 to vector<2x64xf32>
    %28 = arith.maximumf %26, %27 : vector<2x64xf32>
    %c0_18 = arith.constant 0 : index
    %c0_19 = arith.constant 0 : index
    %29 = vector.load %arg5[%c0_18, %c0_19] : memref<64x16xf32, #tpu.memory_space<vmem>>, vector<64x16xf32>
    %cst_20 = arith.constant dense<0.000000e+00> : vector<2x16xf32>
    %30 = tpu.matmul %28, %29, %cst_20 {dimension_numbers = #tpu.dot_dimension_numbers<[1], [0], [0], [1], [0, 0, 1, 1], [], []>} : vector<2x64xf32>, vector<64x16xf32>, vector<2x16xf32> -> vector<2x16xf32>
    %c0_21 = arith.constant 0 : index
    %c0_22 = arith.constant 0 : index
    %31 = vector.load %arg6[%c0_21, %c0_22] : memref<1x16xf32, #tpu.memory_space<vmem>>, vector<1x16xf32>
    %32 = vector.broadcast %31 : vector<1x16xf32> to vector<2x16xf32>
    %33 = arith.addf %30, %32 : vector<2x16xf32>
    %c0_23 = arith.constant 0 : index
    %c0_24 = arith.constant 0 : index
    %34 = vector.load %arg7[%c0_23, %c0_24] : memref<16x128xf32, #tpu.memory_space<vmem>>, vector<16x128xf32>
    %cst_25 = arith.constant dense<0.000000e+00> : vector<2x128xf32>
    %35 = tpu.matmul %33, %34, %cst_25 {dimension_numbers = #tpu.dot_dimension_numbers<[1], [0], [0], [1], [0, 0, 1, 1], [], []>} : vector<2x16xf32>, vector<16x128xf32>, vector<2x128xf32> -> vector<2x128xf32>
    %c0_26 = arith.constant 0 : index
    %c0_27 = arith.constant 0 : index
    %36 = vector.load %arg8[%c0_26, %c0_27] : memref<1x128xf32, #tpu.memory_space<vmem>>, vector<1x128xf32>
    %37 = vector.broadcast %36 : vector<1x128xf32> to vector<2x128xf32>
    %38 = arith.addf %35, %37 : vector<2x128xf32>
    %c0_28 = arith.constant 0 : index
    %c0_29 = arith.constant 0 : index
    %39 = vector.load %arg9[%c0_28, %c0_29] : memref<2x128xf32, #tpu.memory_space<vmem>>, vector<2x128xf32>
    tpu.vector_store %arg9[%c0_28, %c0_29], %38 {strides = array<i32>} : memref<2x128xf32, #tpu.memory_space<vmem>>, vector<2x128xf32>,
    return
  }
}

</mosaic_0001>

<llo_original>
// kernel: tpu_custom_call.1
$region0: #{tpu_custom_call.1}
  #allocation0 [shape = 'u32[]', space=smem, size = 0x4, offset = 0x4, fixed_abs, tag = 'smem constant byte address 0x4 - core index']
  #allocation1 [shape = 'u32[144,128]{1,0:T(1,128)}', space=vmem, size = 0x12000, scoped, tag = 'internal scratch']
  #allocation2 [shape = 'f32[2,48]{1,0:T(2,128)}', space=vmem, size = 0x400, scoped, tag = 'scratch operand']
  %s0 = inlined_call_operand.vmem [shape: f32[24,256], index: 0, kind: input, shape index: {}]
  %s1 = inlined_call_operand.vmem [shape: f32[256,16], index: 1, kind: input, shape index: {}]
  %s2 = inlined_call_operand.vmem [shape: f32[1,16], index: 2, kind: input, shape index: {}]
  %s3 = inlined_call_operand.vmem [shape: f32[48,64], index: 3, kind: input, shape index: {}]
  %s4 = inlined_call_operand.vmem [shape: f32[1,64], index: 4, kind: input, shape index: {}]
  %s5 = inlined_call_operand.vmem [shape: f32[64,16], index: 5, kind: input, shape index: {}]
  %s6 = inlined_call_operand.vmem [shape: f32[1,16], index: 6, kind: input, shape index: {}]
  %s7 = inlined_call_operand.vmem [shape: f32[16,128], index: 7, kind: input, shape index: {}]
  %s8 = inlined_call_operand.vmem [shape: f32[1,128], index: 8, kind: input, shape index: {}]
  %s9 = inlined_call_operand.hbm [shape: f32[2,128], index: 9, kind: output, shape index: {}]
  %s10 = sld [smem:[#allocation0]]
  $region46: #{tpu_custom_call.1} parent=0
    _
  %s12 = ssub.s32 1, %s10
  %s13 = scalar_select 0, %s12, %s10
  $region1: #{tpu_custom_call.1} parent=0
    #allocation3 [shape = 'u8[1024]{0}', space=vmem, size = 0x400, scoped, tag = 'output window, operand 0, single buffered']
    #allocation4 [shape = 's32[1]{0}', space=sflag, size = 0x4, scoped, tag = 'scoped memory for tpu_custom_call.1']
    %14 = vsyncpa [#allocation4], 0
    // Predicated region
    $region2: #{tpu_custom_call.1} parent=1 // pred_check
      _
    $region3: #{tpu_custom_call.1} parent=1 // pred_check_branch
      %16 = sbr.rel (0) target = $region5
    $region4: #{tpu_custom_call.1} parent=1 // pred_region
      _
    $region5: #{tpu_custom_call.1} parent=1 // pred_fallthru
      _
    // Predicated region
    $region6: #{tpu_custom_call.1} parent=1 // pred_check
      _
    $region7: #{tpu_custom_call.1} parent=1 // pred_check_branch
      %18 = sbr.rel (0) target = $region9
    $region8: #{tpu_custom_call.1} parent=1 // pred_region
      _
    $region9: #{tpu_custom_call.1} parent=1 // pred_fallthru
      _
    // Predicated region
    $region10: #{tpu_custom_call.1} parent=1 // pred_check
      _
    $region11: #{tpu_custom_call.1} parent=1 // pred_check_branch
      %20 = sbr.rel (0) target = $region13
    $region12: #{tpu_custom_call.1} parent=1 // pred_region
      _
    $region13: #{tpu_custom_call.1} parent=1 // pred_fallthru
      _
    // Predicated region
    $region14: #{tpu_custom_call.1} parent=1 // pred_check
      _
    $region15: #{tpu_custom_call.1} parent=1 // pred_check_branch
      %22 = sbr.rel (0) target = $region17
    $region16: #{tpu_custom_call.1} parent=1 // pred_region
      _
    $region17: #{tpu_custom_call.1} parent=1 // pred_fallthru
      _
    // Predicated region
    $region18: #{tpu_custom_call.1} parent=1 // pred_check
      _
    $region19: #{tpu_custom_call.1} parent=1 // pred_check_branch
      %24 = sbr.rel (0) target = $region21
    $region20: #{tpu_custom_call.1} parent=1 // pred_region
      _
    $region21: #{tpu_custom_call.1} parent=1 // pred_fallthru
      _
    // Predicated region
    $region22: #{tpu_custom_call.1} parent=1 // pred_check
      _
    $region23: #{tpu_custom_call.1} parent=1 // pred_check_branch
      %26 = sbr.rel (0) target = $region25
    $region24: #{tpu_custom_call.1} parent=1 // pred_region
      _
    $region25: #{tpu_custom_call.1} parent=1 // pred_fallthru
      _
    // Predicated region
    $region26: #{tpu_custom_call.1} parent=1 // pred_check
      _
    $region27: #{tpu_custom_call.1} parent=1 // pred_check_branch
      %28 = sbr.rel (0) target = $region29
    $region28: #{tpu_custom_call.1} parent=1 // pred_region
      _
    $region29: #{tpu_custom_call.1} parent=1 // pred_fallthru
      _
    // Predicated region
    $region30: #{tpu_custom_call.1} parent=1 // pred_check
      _
    $region31: #{tpu_custom_call.1} parent=1 // pred_check_branch
      %30 = sbr.rel (0) target = $region33
    $region32: #{tpu_custom_call.1} parent=1 // pred_region
      _
    $region33: #{tpu_custom_call.1} parent=1 // pred_fallthru
      _
    // Predicated region
    $region34: #{tpu_custom_call.1} parent=1 // pred_check
      _
    $region35: #{tpu_custom_call.1} parent=1 // pred_check_branch
      %32 = sbr.rel (0) target = $region37
    $region36: #{tpu_custom_call.1} parent=1 // pred_region
      _
    $region37: #{tpu_custom_call.1} parent=1 // pred_fallthru
      _
    %v33 = vld [vmem:[%s0] sm:$0xff]
    %v34 = vld [vmem:[%s0 + $0x8] sm:$0xff]
    %v35 = vld [vmem:[%s0 + $0x10] sm:$0xff]
    %v36 = vld [vmem:[%s0 + $0x18] sm:$0xff]
    %v37 = vld [vmem:[%s0 + $0x20] sm:$0xff]
    %v38 = vld [vmem:[%s0 + $0x28] sm:$0xff]
    %v39 = vld [vmem:[%s1] sm:$0xff]
    %v40 = vld [vmem:[%s1 + $0x8] sm:$0xff]
    %v41 = vld [vmem:[%s1 + $0x10] sm:$0xff]
    %v42 = vld [vmem:[%s1 + $0x18] sm:$0xff]
    %v43 = vld [vmem:[%s1 + $0x20] sm:$0xff]
    %v44 = vld [vmem:[%s1 + $0x28] sm:$0xff]
    %v45 = vld [vmem:[%s1 + $0x30] sm:$0xff]
    %v46 = vld [vmem:[%s1 + $0x38] sm:$0xff]
    %v47 = vld [vmem:[%s1 + $0x40] sm:$0xff]
    %v48 = vld [vmem:[%s1 + $0x48] sm:$0xff]
    %v49 = vld [vmem:[%s1 + $0x50] sm:$0xff]
    %v50 = vld [vmem:[%s1 + $0x58] sm:$0xff]
    %v51 = vld [vmem:[%s1 + $0x60] sm:$0xff]
    %v52 = vld [vmem:[%s1 + $0x68] sm:$0xff]
    %v53 = vld [vmem:[%s1 + $0x70] sm:$0xff]
    %v54 = vld [vmem:[%s1 + $0x78] sm:$0xff]
    %v55 = vld [vmem:[%s1 + $0x80] sm:$0xff]
    %v56 = vld [vmem:[%s1 + $0x88] sm:$0xff]
    %v57 = vld [vmem:[%s1 + $0x90] sm:$0xff]
    %v58 = vld [vmem:[%s1 + $0x98] sm:$0xff]
    %v59 = vld [vmem:[%s1 + $0xa0] sm:$0xff]
    %v60 = vld [vmem:[%s1 + $0xa8] sm:$0xff]
    %v61 = vld [vmem:[%s1 + $0xb0] sm:$0xff]
    %v62 = vld [vmem:[%s1 + $0xb8] sm:$0xff]
    %v63 = vld [vmem:[%s1 + $0xc0] sm:$0xff]
    %v64 = vld [vmem:[%s1 + $0xc8] sm:$0xff]
    %v65 = vld [vmem:[%s1 + $0xd0] sm:$0xff]
    %v66 = vld [vmem:[%s1 + $0xd8] sm:$0xff]
    %v67 = vld [vmem:[%s1 + $0xe0] sm:$0xff]
    %v68 = vld [vmem:[%s1 + $0xe8] sm:$0xff]
    %v69 = vld [vmem:[%s1 + $0xf0] sm:$0xff]
    %v70 = vld [vmem:[%s1 + $0xf8] sm:$0xff]
    %v71 = vld [vmem:[%s2] sm:$0x1]
    %v73 = vlaneseq
    %v74 = vshrl.u32 %v73, 7
    %v75 = vsub.s32 0, %v74
    %v76 = vrot.slane %v71, %v75
    %78 = vmatprep.subr.mxu0 0.0
    %79 = vmatpush1.msra.mxu0 %v54
    %80 = vmatprep.subr.mxu0 0.0
    %81 = vmatpush1.msra.mxu0 %v53
    %82 = vmatprep.subr.mxu0 0.0
    %83 = vmatpush1.msra.mxu0 %v52
    %84 = vmatprep.subr.mxu0 0.0
    %85 = vmatpush1.msra.mxu0 %v51
    %86 = vmatprep.subr.mxu0 0.0
    %87 = vmatpush1.msra.mxu0 %v50
    %88 = vmatprep.subr.mxu0 0.0
    %89 = vmatpush1.msra.mxu0 %v49
    %90 = vmatprep.subr.mxu0 0.0
    %91 = vmatpush1.msra.mxu0 %v48
    %92 = vmatprep.subr.mxu0 0.0
    %93 = vmatpush1.msra.mxu0 %v47
    %94 = vmatprep.subr.mxu0 0.0
    %95 = vmatpush1.msra.mxu0 %v46
    %96 = vmatprep.subr.mxu0 0.0
    %97 = vmatpush1.msra.mxu0 %v45
    %98 = vmatprep.subr.mxu0 0.0
    %99 = vmatpush1.msra.mxu0 %v44
    %100 = vmatprep.subr.mxu0 0.0
    %101 = vmatpush1.msra.mxu0 %v43
    %102 = vmatprep.subr.mxu0 0.0
    %103 = vmatpush1.msra.mxu0 %v42
    %104 = vmatprep.subr.mxu0 0.0
    %105 = vmatpush1.msra.mxu0 %v41
    %106 = vmatprep.subr.mxu0 0.0
    %107 = vmatpush1.msra.mxu0 %v40
    %108 = vmatprep.subr.mxu0 0.0
    %109 = vmatpush1.msra.mxu0 %v39
    %110 = vmatprep.subr.mxu0 0.0
    %111 = vmatpush2.msra.mxu0 %v70
    %112 = vmatprep.subr.mxu0 0.0
    %113 = vmatpush2.msra.mxu0 %v69
    %114 = vmatprep.subr.mxu0 0.0
    %115 = vmatpush2.msra.mxu0 %v68
    %116 = vmatprep.subr.mxu0 0.0
    %117 = vmatpush2.msra.mxu0 %v67
    %118 = vmatprep.subr.mxu0 0.0
    %119 = vmatpush2.msra.mxu0 %v66
    %120 = vmatprep.subr.mxu0 0.0
    %121 = vmatpush2.msra.mxu0 %v65
    %122 = vmatprep.subr.mxu0 0.0
    %123 = vmatpush2.msra.mxu0 %v64
    %124 = vmatprep.subr.mxu0 0.0
    %125 = vmatpush2.msra.mxu0 %v63
    %126 = vmatprep.subr.mxu0 0.0
    %127 = vmatpush2.msra.mxu0 %v62
    %128 = vmatprep.subr.mxu0 0.0
    %129 = vmatpush2.msra.mxu0 %v61
    %130 = vmatprep.subr.mxu0 0.0
    %131 = vmatpush2.msra.mxu0 %v60
    %132 = vmatprep.subr.mxu0 0.0
    %133 = vmatpush2.msra.mxu0 %v59
    %134 = vmatprep.subr.mxu0 0.0
    %135 = vmatpush2.msra.mxu0 %v58
    %136 = vmatprep.subr.mxu0 0.0
    %137 = vmatpush2.msra.mxu0 %v57
    %138 = vmatprep.subr.mxu0 0.0
    %139 = vmatpush2.msra.mxu0 %v56
    %140 = vmatprep.subr.mxu0 0.0
    %141 = vmatpush2.msra.mxu0 %v55
    %142 = vmatprep.mubr.f32.mxu0 %v34
    %143 = vmatmul.mubr.f32.gmra.mxu0 %v33
    %v144 = vpop.f32.mrf.mxu0
    %v145 = vadd.f32 %v76, %v144
    %v146 = vpop.f32.mrf.mxu0
    %147 = vmatprep.mubr.f32.mxu0 %v36
    %148 = vmatmul.mubr.f32.gmra.mxu0 %v35
    %v149 = vpop.f32.mrf.mxu0
    %v150 = vadd.f32 %v76, %v149
    %v151 = vpop.f32.mrf.mxu0
    %152 = vmatprep.mubr.f32.mxu0 %v38
    %153 = vmatmul.mubr.f32.gmra.mxu0 %v37
    %v154 = vpop.f32.mrf.mxu0
    %v155 = vadd.f32 %v76, %v154
    %v156 = vpop.f32.mrf.mxu0
    %157 = vdwg.mxu0
    %v158 = vmax.f32 %v145, 0.0
    %v159 = vmax.f32 %v150, 0.0
    %v160 = vmax.f32 %v155, 0.0
    %vm163 = vcmask 1041408
    %v164 = vrot.slane %v158, 6
    %v165 = vrot.slane %v159, 6
    %v166 = vsel %vm163, %v164, %v165
    %v168 = vmax.f32 %v158, %v166
    %vm170 = vcmask 1043456
    %v171 = vrot.slane %v159, 4
    %v172 = vrot.slane %v160, 4
    %v173 = vsel %vm170, %v171, %v172
    %v175 = vmax.f32 %v168, %v173
    %v176 = vrot.slane %v160, 2
    %v178 = vmax.f32 %v175, %v176
    %vm179 = vcmask 123904
    %180 = vst.msk [vmem:[#allocation2] sm:$0x3] %vm179, %v178
    %182 = vrot.lane.b32.xlu0 %v178, 16
    %v183 = vpop.permute.xlu0 %182
    %vm185 = vcmask 257154
    %186 = vst.msk [vmem:[#allocation2 - $0x2] sm:$0xc] %vm185, %v183
    %187 = vrot.lane.b32.xlu0 %v178, 32
    %v188 = vpop.permute.xlu0 %187
    %vm190 = vcmask 390404
    %191 = vst.msk [vmem:[#allocation2 - $0x4] sm:$0x30] %vm190, %v188
    %v192 = vld [vmem:[#allocation2] sm:$0x3]
    %v193 = vld [vmem:[%s3] sm:$0xff]
    %v194 = vld [vmem:[%s3 + $0x8] sm:$0xff]
    %v195 = vld [vmem:[%s3 + $0x10] sm:$0xff]
    %v196 = vld [vmem:[%s3 + $0x18] sm:$0xff]
    %v197 = vld [vmem:[%s3 + $0x20] sm:$0xff]
    %v198 = vld [vmem:[%s3 + $0x28] sm:$0xff]
    %v199 = vld [vmem:[%s4] sm:$0x1]
    %v201 = vlaneseq
    %v202 = vshrl.u32 %v201, 7
    %v203 = vsub.s32 0, %v202
    %v204 = vrot.slane %v199, %v203
    %vm206 = vcmask 392192
    %v208 = vsel %vm206, %v192, 0
    %210 = vmatprep.subr.mxu0 0.0
    %211 = vmatpush1.msra.mxu0 0.0
    %212 = vmatprep.subr.mxu0 0.0
    %213 = vmatpush1.msra.mxu0 0.0
    %214 = vmatprep.subr.mxu0 0.0
    %215 = vmatpush1.msra.mxu0 0.0
    %216 = vmatprep.subr.mxu0 0.0
    %217 = vmatpush1.msra.mxu0 0.0
    %218 = vmatprep.subr.mxu0 0.0
    %219 = vmatpush1.msra.mxu0 0.0
    %220 = vmatprep.subr.mxu0 0.0
    %221 = vmatpush1.msra.mxu0 0.0
    %222 = vmatprep.subr.mxu0 0.0
    %223 = vmatpush1.msra.mxu0 0.0
    %224 = vmatprep.subr.mxu0 0.0
    %225 = vmatpush1.msra.mxu0 0.0
    %226 = vmatprep.subr.mxu0 0.0
    %227 = vmatpush1.msra.mxu0 0.0
    %228 = vmatprep.subr.mxu0 0.0
    %229 = vmatpush1.msra.mxu0 0.0
    %230 = vmatprep.subr.mxu0 0.0
    %231 = vmatpush1.msra.mxu0 %v198
    %232 = vmatprep.subr.mxu0 0.0
    %233 = vmatpush1.msra.mxu0 %v197
    %234 = vmatprep.subr.mxu0 0.0
    %235 = vmatpush1.msra.mxu0 %v196
    %236 = vmatprep.subr.mxu0 0.0
    %237 = vmatpush1.msra.mxu0 %v195
    %238 = vmatprep.subr.mxu0 0.0
    %239 = vmatpush1.msra.mxu0 %v194
    %240 = vmatprep.subr.mxu0 0.0
    %241 = vmatpush1.msra.mxu0 %v193
    %242 = vmatprep.subr.mxu0 0.0
    %243 = vmatpush2.msra.mxu0 0.0
    %244 = vmatprep.subr.mxu0 0.0
    %245 = vmatpush2.msra.mxu0 0.0
    %246 = vmatprep.subr.mxu0 0.0
    %247 = vmatpush2.msra.mxu0 0.0
    %248 = vmatprep.subr.mxu0 0.0
    %249 = vmatpush2.msra.mxu0 0.0
    %250 = vmatprep.subr.mxu0 0.0
    %251 = vmatpush2.msra.mxu0 0.0
    %252 = vmatprep.subr.mxu0 0.0
    %253 = vmatpush2.msra.mxu0 0.0
    %254 = vmatprep.subr.mxu0 0.0
    %255 = vmatpush2.msra.mxu0 0.0
    %256 = vmatprep.subr.mxu0 0.0
    %257 = vmatpush2.msra.mxu0 0.0
    %258 = vmatprep.subr.mxu0 0.0
    %259 = vmatpush2.msra.mxu0 0.0
    %260 = vmatprep.subr.mxu0 0.0
    %261 = vmatpush2.msra.mxu0 0.0
    %262 = vmatprep.subr.mxu0 0.0
    %263 = vmatpush2.msra.mxu0 0.0
    %264 = vmatprep.subr.mxu0 0.0
    %265 = vmatpush2.msra.mxu0 0.0
    %266 = vmatprep.subr.mxu0 0.0
    %267 = vmatpush2.msra.mxu0 0.0
    %268 = vmatprep.subr.mxu0 0.0
    %269 = vmatpush2.msra.mxu0 0.0
    %270 = vmatprep.subr.mxu0 0.0
    %271 = vmatpush2.msra.mxu0 0.0
    %272 = vmatprep.subr.mxu0 0.0
    %273 = vmatpush2.msra.mxu0 0.0
    %274 = vmatprep.mubr.f32.mxu0 0.0
    %275 = vmatmul.mubr.f32.gmra.mxu0 %v208
    %v276 = vpop.f32.mrf.mxu0
    %v277 = vadd.f32 %v204, %v276
    %v278 = vpop.f32.mrf.mxu0
    %279 = vdwg.mxu0
    %v280 = vmax.f32 %v277, 0.0
    %v281 = vld [vmem:[%s5] sm:$0xff]
    %v282 = vld [vmem:[%s5 + $0x8] sm:$0xff]
    %v283 = vld [vmem:[%s5 + $0x10] sm:$0xff]
    %v284 = vld [vmem:[%s5 + $0x18] sm:$0xff]
    %v285 = vld [vmem:[%s5 + $0x20] sm:$0xff]
    %v286 = vld [vmem:[%s5 + $0x28] sm:$0xff]
    %v287 = vld [vmem:[%s5 + $0x30] sm:$0xff]
    %v288 = vld [vmem:[%s5 + $0x38] sm:$0xff]
    %v289 = vld [vmem:[%s6] sm:$0x1]
    %v291 = vlaneseq
    %v292 = vshrl.u32 %v291, 7
    %v293 = vsub.s32 0, %v292
    %v294 = vrot.slane %v289, %v293
    %vm296 = vcmask 523264
    %v298 = vsel %vm296, %v280, 0
    %300 = vmatprep.subr.mxu0 0.0
    %301 = vmatpush1.msra.mxu0 0.0
    %302 = vmatprep.subr.mxu0 0.0
    %303 = vmatpush1.msra.mxu0 0.0
    %304 = vmatprep.subr.mxu0 0.0
    %305 = vmatpush1.msra.mxu0 0.0
    %306 = vmatprep.subr.mxu0 0.0
    %307 = vmatpush1.msra.mxu0 0.0
    %308 = vmatprep.subr.mxu0 0.0
    %309 = vmatpush1.msra.mxu0 0.0
    %310 = vmatprep.subr.mxu0 0.0
    %311 = vmatpush1.msra.mxu0 0.0
    %312 = vmatprep.subr.mxu0 0.0
    %313 = vmatpush1.msra.mxu0 0.0
    %314 = vmatprep.subr.mxu0 0.0
    %315 = vmatpush1.msra.mxu0 0.0
    %316 = vmatprep.subr.mxu0 0.0
    %317 = vmatpush1.msra.mxu0 %v288
    %318 = vmatprep.subr.mxu0 0.0
    %319 = vmatpush1.msra.mxu0 %v287
    %320 = vmatprep.subr.mxu0 0.0
    %321 = vmatpush1.msra.mxu0 %v286
    %322 = vmatprep.subr.mxu0 0.0
    %323 = vmatpush1.msra.mxu0 %v285
    %324 = vmatprep.subr.mxu0 0.0
    %325 = vmatpush1.msra.mxu0 %v284
    %326 = vmatprep.subr.mxu0 0.0
    %327 = vmatpush1.msra.mxu0 %v283
    %328 = vmatprep.subr.mxu0 0.0
    %329 = vmatpush1.msra.mxu0 %v282
    %330 = vmatprep.subr.mxu0 0.0
    %331 = vmatpush1.msra.mxu0 %v281
    %332 = vmatprep.subr.mxu0 0.0
    %333 = vmatpush2.msra.mxu0 0.0
    %334 = vmatprep.subr.mxu0 0.0
    %335 = vmatpush2.msra.mxu0 0.0
    %336 = vmatprep.subr.mxu0 0.0
    %337 = vmatpush2.msra.mxu0 0.0
    %338 = vmatprep.subr.mxu0 0.0
    %339 = vmatpush2.msra.mxu0 0.0
    %340 = vmatprep.subr.mxu0 0.0
    %341 = vmatpush2.msra.mxu0 0.0
    %342 = vmatprep.subr.mxu0 0.0
    %343 = vmatpush2.msra.mxu0 0.0
    %344 = vmatprep.subr.mxu0 0.0
    %345 = vmatpush2.msra.mxu0 0.0
    %346 = vmatprep.subr.mxu0 0.0
    %347 = vmatpush2.msra.mxu0 0.0
    %348 = vmatprep.subr.mxu0 0.0
    %349 = vmatpush2.msra.mxu0 0.0
    %350 = vmatprep.subr.mxu0 0.0
    %351 = vmatpush2.msra.mxu0 0.0
    %352 = vmatprep.subr.mxu0 0.0
    %353 = vmatpush2.msra.mxu0 0.0
    %354 = vmatprep.subr.mxu0 0.0
    %355 = vmatpush2.msra.mxu0 0.0
    %356 = vmatprep.subr.mxu0 0.0
    %357 = vmatpush2.msra.mxu0 0.0
    %358 = vmatprep.subr.mxu0 0.0
    %359 = vmatpush2.msra.mxu0 0.0
    %360 = vmatprep.subr.mxu0 0.0
    %361 = vmatpush2.msra.mxu0 0.0
    %362 = vmatprep.subr.mxu0 0.0
    %363 = vmatpush2.msra.mxu0 0.0
    %364 = vmatprep.mubr.f32.mxu0 0.0
    %365 = vmatmul.mubr.f32.gmra.mxu0 %v298
    %v366 = vpop.f32.mrf.mxu0
    %v367 = vadd.f32 %v294, %v366
    %v368 = vpop.f32.mrf.mxu0
    %369 = vdwg.mxu0
    %v370 = vld [vmem:[%s7] sm:$0xff]
    %v371 = vld [vmem:[%s7 + $0x8] sm:$0xff]
    %v372 = vld [vmem:[%s8] sm:$0x1]
    %v374 = vlaneseq
    %v375 = vshrl.u32 %v374, 7
    %v376 = vsub.s32 0, %v375
    %v377 = vrot.slane %v372, %v376
    %vm379 = vcmask 130048
    %v381 = vsel %vm379, %v367, 0
    %383 = vmatprep.subr.mxu0 0.0
    %384 = vmatpush1.msra.mxu0 0.0
    %385 = vmatprep.subr.mxu0 0.0
    %386 = vmatpush1.msra.mxu0 0.0
    %387 = vmatprep.subr.mxu0 0.0
    %388 = vmatpush1.msra.mxu0 0.0
    %389 = vmatprep.subr.mxu0 0.0
    %390 = vmatpush1.msra.mxu0 0.0
    %391 = vmatprep.subr.mxu0 0.0
    %392 = vmatpush1.msra.mxu0 0.0
    %393 = vmatprep.subr.mxu0 0.0
    %394 = vmatpush1.msra.mxu0 0.0
    %395 = vmatprep.subr.mxu0 0.0
    %396 = vmatpush1.msra.mxu0 0.0
    %397 = vmatprep.subr.mxu0 0.0
    %398 = vmatpush1.msra.mxu0 0.0
    %399 = vmatprep.subr.mxu0 0.0
    %400 = vmatpush1.msra.mxu0 0.0
    %401 = vmatprep.subr.mxu0 0.0
    %402 = vmatpush1.msra.mxu0 0.0
    %403 = vmatprep.subr.mxu0 0.0
    %404 = vmatpush1.msra.mxu0 0.0
    %405 = vmatprep.subr.mxu0 0.0
    %406 = vmatpush1.msra.mxu0 0.0
    %407 = vmatprep.subr.mxu0 0.0
    %408 = vmatpush1.msra.mxu0 0.0
    %409 = vmatprep.subr.mxu0 0.0
    %410 = vmatpush1.msra.mxu0 0.0
    %411 = vmatprep.subr.mxu0 0.0
    %412 = vmatpush1.msra.mxu0 %v371
    %413 = vmatprep.subr.mxu0 0.0
    %414 = vmatpush1.msra.mxu0 %v370
    %415 = vmatprep.subr.mxu0 0.0
    %416 = vmatpush2.msra.mxu0 0.0
    %417 = vmatprep.subr.mxu0 0.0
    %418 = vmatpush2.msra.mxu0 0.0
    %419 = vmatprep.subr.mxu0 0.0
    %420 = vmatpush2.msra.mxu0 0.0
    %421 = vmatprep.subr.mxu0 0.0
    %422 = vmatpush2.msra.mxu0 0.0
    %423 = vmatprep.subr.mxu0 0.0
    %424 = vmatpush2.msra.mxu0 0.0
    %425 = vmatprep.subr.mxu0 0.0
    %426 = vmatpush2.msra.mxu0 0.0
    %427 = vmatprep.subr.mxu0 0.0
    %428 = vmatpush2.msra.mxu0 0.0
    %429 = vmatprep.subr.mxu0 0.0
    %430 = vmatpush2.msra.mxu0 0.0
    %431 = vmatprep.subr.mxu0 0.0
    %432 = vmatpush2.msra.mxu0 0.0
    %433 = vmatprep.subr.mxu0 0.0
    %434 = vmatpush2.msra.mxu0 0.0
    %435 = vmatprep.subr.mxu0 0.0
    %436 = vmatpush2.msra.mxu0 0.0
    %437 = vmatprep.subr.mxu0 0.0
    %438 = vmatpush2.msra.mxu0 0.0
    %439 = vmatprep.subr.mxu0 0.0
    %440 = vmatpush2.msra.mxu0 0.0
    %441 = vmatprep.subr.mxu0 0.0
    %442 = vmatpush2.msra.mxu0 0.0
    %443 = vmatprep.subr.mxu0 0.0
    %444 = vmatpush2.msra.mxu0 0.0
    %445 = vmatprep.subr.mxu0 0.0
    %446 = vmatpush2.msra.mxu0 0.0
    %447 = vmatprep.mubr.f32.mxu0 0.0
    %448 = vmatmul.mubr.f32.gmra.mxu0 %v381
    %v449 = vpop.f32.mrf.mxu0
    %v450 = vadd.f32 %v377, %v449
    %v451 = vpop.f32.mrf.mxu0
    %452 = vdwg.mxu0
    %453 = vst [vmem:[#allocation3] sm:$0x3] %v450
    // Predicated region
    $region38: #{tpu_custom_call.1} parent=1 // pred_check
      _
    $region39: #{tpu_custom_call.1} parent=1 // pred_check_branch
      %455 = sbr.rel (0) target = $region41
    $region40: #{tpu_custom_call.1} parent=1 // pred_region
      %s457 = ssub.s32 32, 32
      %458 = vsyncadd [#allocation4], %s457
      %s460 = sshll.u32 [#allocation3], 4
      %s461 = int_to_ptr.vmem [resolvable:$true] %s460
      %463 = dma.vmem_to_hbm [thread:$0]  %s461, 32, %s9, [#allocation4]
    $region41: #{tpu_custom_call.1} parent=1 // pred_fallthru
      _
    // Predicated region
    $region42: #{tpu_custom_call.1} parent=1 // pred_check
      _
    $region43: #{tpu_custom_call.1} parent=1 // pred_check_branch
      %465 = sbr.rel (0) target = $region45
    $region44: #{tpu_custom_call.1} parent=1 // pred_region
      %466 = dma.done [#allocation4], 32
    $region45: #{tpu_custom_call.1} parent=1 // pred_fallthru
      _
    %467 = vsyncpa [#allocation4], 1

</llo_original>
